<compile_context>
chip_gen: v7x
topology: tpu7x:2x2x1
jax: 0.10.0
libtpu: 0.0.40
codegen_flags: <defaults>
</compile_context>

<pallas_src>
import jax
import jax.numpy as jnp
from jax.experimental import pallas as pl
from jax.experimental.pallas import tpu as pltpu


def _make_kernel(H, lane_chunks, acc_w):
    """Build the kernel with static tiling constants baked in.

    Grid = (N, P, L_tiles).  Per grid step:
      x_ref   : (1, C, Lb)   f32  NCL input tile (L on lanes; cast to bf16 in-kernel)
      w1t_ref : (H, C)       bf16 repeat-folded pointwise-conv weight, transposed
      nb1_ref : (H, 1)       f32  NEGATED conv bias (for the max(z,-b) ReLU fold)
      w2ts_ref: (K, H)       f32  classifier weight, pre-scaled by 1/(L*beforeT*afterT)
      o_ref   : (1, K, 1)    f32  partial logits for (sample n, L-split p); bias added in wrapper
      acc_ref : (H, acc_w)   f32  lane-dense running sum of max(conv, -b1)
    """

    def kernel(x_ref, w1t_ref, nb1_ref, w2ts_ref, o_ref, acc_ref):
        l = pl.program_id(2)

        @pl.when(l == 0)
        def _init():
            acc_ref[...] = jnp.zeros_like(acc_ref)

        # In-kernel bf16 cast (no extra HBM pass in the wrapper).
        xb = x_ref[0].astype(jnp.bfloat16)                                   # (C, Lb)
        # Pointwise (k=1) conv == (H,C)@(C,Lb) on the MXU, f32 accumulation.
        z = jnp.dot(w1t_ref[...], xb, preferred_element_type=jnp.float32)    # (H, Lb)
        # Bias+ReLU in a single VPU op: ReLU(z+b) = max(z,-b) + b; the "+L*b"
        # term is pre-folded into the classifier bias in the wrapper.
        h = jnp.maximum(z, nb1_ref[...])                                     # (H, Lb)

        # Lane-dense accumulation: per-step work is plain vreg adds; the one
        # cross-lane reduce per sample happens only in the finalize block.
        if lane_chunks > 1:
            acc_ref[...] += h.reshape(H, lane_chunks, acc_w).sum(axis=1)
        else:
            acc_ref[...] += h

        # TODO(synk): Dropout(p=0.8) training-mode masking not implemented
        # (module default is off); this kernel is inference-only.

        @pl.when(l == pl.num_programs(2) - 1)
        def _finalize():
            s = jnp.sum(acc_ref[...], axis=1, keepdims=True)                 # (H, 1)
            o_ref[0] = jnp.dot(w2ts_ref[...], s,
                               preferred_element_type=jnp.float32)           # (K, 1)

    return kernel


def _pick_l_tile(l_split, C, H, vmem_budget=24 * 1024 * 1024):
    """Largest lane-aligned L tile whose working set fits the VMEM budget.

    Budget terms: 2x double-buffered f32 x tile, in-kernel bf16 x copy,
    2x f32 (H, Lb) temporaries, (H, 128) accumulator.  24 MiB leaves headroom
    under the 32 MiB scoped limit even on v7x (64 MiB physical VMEM).
    """
    for lb in (8192, 4096, 2048, 1024, 512, 256, 128):
        if l_split % lb:
            continue
        est = 2 * C * lb * 4 + C * lb * 2 + 2 * H * lb * 4 + H * 128 * 4
        if est <= vmem_budget:
            return lb
    return l_split  # small / unaligned L: one full-length tile (== full dim)


def single2single_forward(x_ncl, w1, b1, w2, b2, *,
                          repeat_input=1, beforeT=1.0, afterT=1.0):
    """x_ncl: (N, C, L) f32.  w1: (C*repeat_input, H), b1: (H,), w2: (H, K), b2: (K,).
    Returns (N, K) logits matching Single2Single.forward with
    backbone = Conv1d(k=1)+ReLU+global-avg-pool and classifier = Linear."""
    N, C, L = x_ncl.shape
    Cin, H = w1.shape
    assert Cin == C * repeat_input
    K = w2.shape[1]

    # (1) Fold the channel repeat into the conv weight (conv is linear in channels).
    w1_fold = w1.reshape(repeat_input, C, H).sum(axis=0)                      # (C, H) f32
    w1t = w1_fold.T.astype(jnp.bfloat16)                                      # (H, C) bf16
    nb1 = (-b1).reshape(H, 1).astype(jnp.float32)                             # negated bias

    # (2) Fold mean (1/L), /beforeT, /afterT into the tiny f32 classifier weight,
    #     and fold the ReLU-identity constant (L*b1) plus /afterT into the bias
    #     that the wrapper adds once at the end.
    denom = float(L) * float(beforeT) * float(afterT)
    w2ts = (w2.T / denom).astype(jnp.float32)                                 # (K, H)
    b2_eff = (b2 / float(afterT)
              + (b1 @ w2) / (float(beforeT) * float(afterT))).astype(jnp.float32)  # (K,)

    # (3) Optionally split L across a second "parallel" axis so both v7x
    #     TensorCores get work when N == 1 (only when splits stay lane-aligned).
    P = 2 if (N < 2 and L % 2 == 0 and (L // 2) % 128 == 0) else 1
    l_split = L // P

    Lb = _pick_l_tile(l_split, C, H)
    lt_per_split = l_split // Lb
    if Lb % 128 == 0:
        acc_w, lane_chunks = 128, Lb // 128
    else:
        acc_w, lane_chunks = Lb, 1

    grid = (N, P, lt_per_split)
    kernel = _make_kernel(H, lane_chunks, acc_w)

    out = pl.pallas_call(
        kernel,
        out_shape=jax.ShapeDtypeStruct((N * P, K, 1), jnp.float32),
        grid_spec=pltpu.PrefetchScalarGridSpec(
            num_scalar_prefetch=0,
            grid=grid,
            in_specs=[
                pl.BlockSpec((1, C, Lb),
                             lambda n, p, l: (n, 0, p * lt_per_split + l)),   # x tile
                pl.BlockSpec((H, C), lambda n, p, l: (0, 0)),                 # w1t (resident)
                pl.BlockSpec((H, 1), lambda n, p, l: (0, 0)),                 # -b1
                pl.BlockSpec((K, H), lambda n, p, l: (0, 0)),                 # scaled w2
            ],
            out_specs=pl.BlockSpec((1, K, 1),
                                   lambda n, p, l: (n * P + p, 0, 0)),
            scratch_shapes=[pltpu.VMEM((H, acc_w), jnp.float32)],             # lane-dense acc
        ),
        compiler_params=pltpu.CompilerParams(
            dimension_semantics=("parallel", "parallel", "arbitrary"),
            vmem_limit_bytes=32 * 1024 * 1024,
        ),
    )(x_ncl.astype(jnp.float32), w1t, nb1, w2ts)

    partial = out.reshape(N, P, K).sum(axis=1)                                # combine L-splits
    return partial + b2_eff[None, :]


def _reference(x_ncl, w1, b1, w2, b2, *, repeat_input, beforeT, afterT):
    """Pure-JAX f32 reference with the module's literal semantics (explicit repeat)."""
    x = jnp.tile(x_ncl, (1, repeat_input, 1))                                 # (N, Cin, L)
    h = jnp.einsum("ncl,ch->nlh", x, w1) + b1[None, None, :]
    h = jnp.maximum(h, 0.0)
    f = jnp.mean(h, axis=1) / beforeT
    return (f @ w2 + b2[None, :]) / afterT


def _run_case(key, N, C, L, repeat_input, H, K, beforeT, afterT):
    kx, k1, kb1, k2, kb2 = jax.random.split(key, 5)
    Cin = C * repeat_input
    x = jax.random.normal(kx, (N, C, L), dtype=jnp.float32)
    w1 = jax.random.normal(k1, (Cin, H), dtype=jnp.float32) * 0.1
    b1 = jax.random.normal(kb1, (H,), dtype=jnp.float32) * 0.1
    w2 = jax.random.normal(k2, (H, K), dtype=jnp.float32) * 0.1
    b2 = jax.random.normal(kb2, (K,), dtype=jnp.float32) * 0.1

    out = single2single_forward(x, w1, b1, w2, b2,
                                repeat_input=repeat_input,
                                beforeT=beforeT, afterT=afterT)
    out = jax.block_until_ready(out)
    ref = _reference(x, w1, b1, w2, b2,
                     repeat_input=repeat_input, beforeT=beforeT, afterT=afterT)
    assert out.shape == (N, K)
    # bf16 MXU inputs (f32 accumulation) -> loosened tolerance vs. pure-f32 reference.
    assert jnp.allclose(out, ref, atol=2e-2, rtol=2e-2), (out, ref)


if __name__ == "__main__":
    key = jax.random.PRNGKey(0)
    k_a, k_b, k_c = jax.random.split(key, 3)

    # Primary config (matches the module's small example shapes): single full-L tile.
    _run_case(k_a, N=2, C=4, L=16, repeat_input=2, H=32, K=8, beforeT=2.0, afterT=4.0)
    # N=1 -> L split across the second parallel axis (v7x 2-TC path), Lb=128.
    _run_case(k_b, N=1, C=4, L=256, repeat_input=2, H=32, K=8, beforeT=3.0, afterT=1.5)
    # Larger aligned L -> lane-chunked accumulation path (Lb=512, 4 lane chunks).
    _run_case(k_c, N=2, C=4, L=512, repeat_input=3, H=32, K=8, beforeT=1.0, afterT=2.0)

    print("KERNEL_OK")
</pallas_src>

<mosaic_0001>
module attributes {stable_mosaic.version = 11 : i64} {
  func.func @kernel(%arg0: i32, %arg1: i32, %arg2: i32, %arg3: memref<1x4x16xf32, #tpu.memory_space<vmem>>, %arg4: memref<32x4xbf16, #tpu.memory_space<vmem>>, %arg5: memref<32x1xf32, #tpu.memory_space<vmem>>, %arg6: memref<8x32xf32, #tpu.memory_space<vmem>>, %arg7: memref<1x8x1xf32, #tpu.memory_space<vmem>>, %arg8: memref<32x16xf32, #tpu.memory_space<vmem>>) attributes {dimension_semantics = [#tpu.dimension_semantics<parallel>, #tpu.dimension_semantics<parallel>, #tpu.dimension_semantics<arbitrary>], iteration_bounds = array<i64: 2, 1, 1>, scalar_prefetch = 0 : i64, scratch_operands = 1 : i64, tpu.core_type = #tpu.core_type<tc>, window_params = [{transform_indices = @transform_0, window_bounds = array<i64: 1, 4, 16>}, {pipeline_mode = #tpu.pipeline_mode<synchronous>, transform_indices = @transform_1, window_bounds = array<i64: 32, 4>}, {pipeline_mode = #tpu.pipeline_mode<synchronous>, transform_indices = @transform_2, window_bounds = array<i64: 32, 1>}, {pipeline_mode = #tpu.pipeline_mode<synchronous>, transform_indices = @transform_3, window_bounds = array<i64: 8, 32>}, {transform_indices = @transform_4, window_bounds = array<i64: 1, 8, 1>}]} {
    %c0_i32 = arith.constant 0 : i32
    %0 = arith.cmpi eq, %arg2, %c0_i32 : i32
    %1 = arith.extui %0 : i1 to i32
    %c0_i32_0 = arith.constant 0 : i32
    %2 = arith.cmpi ne, %1, %c0_i32_0 : i32
    scf.if %2 {
      %cst_13 = arith.constant 0.000000e+00 : f32
      %17 = vector.broadcast %cst_13 : f32 to vector<32x16xf32>
      %c0_14 = arith.constant 0 : index
      %c0_15 = arith.constant 0 : index
      %18 = vector.load %arg8[%c0_14, %c0_15] : memref<32x16xf32, #tpu.memory_space<vmem>>, vector<32x16xf32>
      tpu.vector_store %arg8[%c0_14, %c0_15], %17 {strides = array<i32>} : memref<32x16xf32, #tpu.memory_space<vmem>>, vector<32x16xf32>,
    } else {
    }
    %c0 = arith.constant 0 : index
    %c0_1 = arith.constant 0 : index
    %c0_2 = arith.constant 0 : index
    %3 = vector.load %arg3[%c0, %c0_1, %c0_2] : memref<1x4x16xf32, #tpu.memory_space<vmem>>, vector<1x4x16xf32>
    %4 = vector.shape_cast %3 : vector<1x4x16xf32> to vector<4x16xf32>
    %5 = arith.truncf %4 : vector<4x16xf32> to vector<4x16xbf16>
    %c0_3 = arith.constant 0 : index
    %c0_4 = arith.constant 0 : index
    %6 = vector.load %arg4[%c0_3, %c0_4] : memref<32x4xbf16, #tpu.memory_space<vmem>>, vector<32x4xbf16>
    %cst = arith.constant dense<0.000000e+00> : vector<32x16xf32>
    %7 = tpu.matmul %6, %5, %cst {dimension_numbers = #tpu.dot_dimension_numbers<[1], [0], [0], [1], [0, 0, 1, 1], [], []>} : vector<32x4xbf16>, vector<4x16xbf16>, vector<32x16xf32> -> vector<32x16xf32>
    %c0_5 = arith.constant 0 : index
    %c0_6 = arith.constant 0 : index
    %8 = vector.load %arg5[%c0_5, %c0_6] : memref<32x1xf32, #tpu.memory_space<vmem>>, vector<32x1xf32>
    %9 = vector.broadcast %8 : vector<32x1xf32> to vector<32x16xf32>
    %10 = arith.maximumf %7, %9 : vector<32x16xf32>
    %c0_7 = arith.constant 0 : index
    %c0_8 = arith.constant 0 : index
    %11 = vector.load %arg8[%c0_7, %c0_8] : memref<32x16xf32, #tpu.memory_space<vmem>>, vector<32x16xf32>
    %12 = arith.addf %11, %10 : vector<32x16xf32>
    %c0_9 = arith.constant 0 : index
    %c0_10 = arith.constant 0 : index
    %13 = vector.load %arg8[%c0_9, %c0_10] : memref<32x16xf32, #tpu.memory_space<vmem>>, vector<32x16xf32>
    tpu.vector_store %arg8[%c0_9, %c0_10], %12 {strides = array<i32>} : memref<32x16xf32, #tpu.memory_space<vmem>>, vector<32x16xf32>,
    %c0_i32_11 = arith.constant 0 : i32
    %14 = arith.cmpi eq, %arg2, %c0_i32_11 : i32
    %15 = arith.extui %14 : i1 to i32
    %c0_i32_12 = arith.constant 0 : i32
    %16 = arith.cmpi ne, %15, %c0_i32_12 : i32
    scf.if %16 {
      %c0_13 = arith.constant 0 : index
      %c0_14 = arith.constant 0 : index
      %17 = vector.load %arg8[%c0_13, %c0_14] : memref<32x16xf32, #tpu.memory_space<vmem>>, vector<32x16xf32>
      %cst_15 = arith.constant dense<0.000000e+00> : vector<32xf32>
      %18 = vector.multi_reduction <add>, %17, %cst_15 [1] : vector<32x16xf32> to vector<32xf32>
      %19 = vector.shape_cast %18 : vector<32xf32> to vector<32x1xf32>
      %c0_16 = arith.constant 0 : index
      %c0_17 = arith.constant 0 : index
      %20 = vector.load %arg6[%c0_16, %c0_17] : memref<8x32xf32, #tpu.memory_space<vmem>>, vector<8x32xf32>
      %cst_18 = arith.constant dense<0.000000e+00> : vector<8x1xf32>
      %21 = tpu.matmul %20, %19, %cst_18 {dimension_numbers = #tpu.dot_dimension_numbers<[1], [0], [0], [1], [0, 0, 1, 1], [], []>} : vector<8x32xf32>, vector<32x1xf32>, vector<8x1xf32> -> vector<8x1xf32>
      %c0_19 = arith.constant 0 : index
      %c0_20 = arith.constant 0 : index
      %c0_21 = arith.constant 0 : index
      %22 = vector.load %arg7[%c0_19, %c0_20, %c0_21] : memref<1x8x1xf32, #tpu.memory_space<vmem>>, vector<1x8x1xf32>
      %23 = vector.shape_cast %22 : vector<1x8x1xf32> to vector<8x1xf32>
      %24 = vector.shape_cast %21 : vector<8x1xf32> to vector<1x8x1xf32>
      tpu.vector_store %arg7[%c0_19, %c0_20, %c0_21], %24 {strides = array<i32>} : memref<1x8x1xf32, #tpu.memory_space<vmem>>, vector<1x8x1xf32>,
    } else {
    }
    return
  }
  func.func @transform_0(%arg0: i32, %arg1: i32, %arg2: i32) -> (i32, i32, i32) {
    %c1_i32 = arith.constant 1 : i32
    %0 = arith.muli %arg1, %c1_i32 : i32
    %1 = arith.addi %0, %arg2 : i32
    %c0_i32 = arith.constant 0 : i32
    %c0_i32_0 = arith.constant 0 : i32
    return %arg0, %c0_i32, %1 : i32, i32, i32
  }
  func.func @transform_1(%arg0: i32, %arg1: i32, %arg2: i32) -> (i32, i32) {
    %c0_i32 = arith.constant 0 : i32
    %c0_i32_0 = arith.constant 0 : i32
    %c0_i32_1 = arith.constant 0 : i32
    return %c0_i32, %c0_i32_0 : i32, i32
  }
  func.func @transform_2(%arg0: i32, %arg1: i32, %arg2: i32) -> (i32, i32) {
    %c0_i32 = arith.constant 0 : i32
    %c0_i32_0 = arith.constant 0 : i32
    %c0_i32_1 = arith.constant 0 : i32
    return %c0_i32, %c0_i32_0 : i32, i32
  }
  func.func @transform_3(%arg0: i32, %arg1: i32, %arg2: i32) -> (i32, i32) {
    %c0_i32 = arith.constant 0 : i32
    %c0_i32_0 = arith.constant 0 : i32
    %c0_i32_1 = arith.constant 0 : i32
    return %c0_i32, %c0_i32_0 : i32, i32
  }
  func.func @transform_4(%arg0: i32, %arg1: i32, %arg2: i32) -> (i32, i32, i32) {
    %c1_i32 = arith.constant 1 : i32
    %0 = arith.muli %arg0, %c1_i32 : i32
    %1 = arith.addi %0, %arg1 : i32
    %c0_i32 = arith.constant 0 : i32
    %c0_i32_0 = arith.constant 0 : i32
    %c0_i32_1 = arith.constant 0 : i32
    return %1, %c0_i32, %c0_i32_0 : i32, i32, i32
  }
}

</mosaic_0001>

<llo_original>
// kernel: tpu_custom_call.1
$region0: #{tpu_custom_call.1}
  #allocation0 [shape = 'u32[]', space=smem, size = 0x4, offset = 0x4, fixed_abs, tag = 'smem constant byte address 0x4 - core index']
  #allocation1 [shape = 'u32[144,128]{1,0:T(1,128)}', space=vmem, size = 0x12000, scoped, tag = 'internal scratch']
  #allocation2 [shape = 'f32[32,16]{1,0:T(8,128)}', space=vmem, size = 0x4000, scoped, tag = 'scratch operand']
  %s0 = inlined_call_operand.vmem [shape: f32[2,4,16], index: 0, kind: input, shape index: {}]
  %s1 = inlined_call_operand.vmem [shape: bf16[32,4], index: 1, kind: input, shape index: {}]
  %s2 = inlined_call_operand.vmem [shape: f32[32,1], index: 2, kind: input, shape index: {}]
  %s3 = inlined_call_operand.vmem [shape: f32[8,32], index: 3, kind: input, shape index: {}]
  %s4 = inlined_call_operand.vmem [shape: f32[2,8,1], index: 4, kind: output, shape index: {}]
  %s5 = sld [smem:[#allocation0]]
  $region57: #{tpu_custom_call.1} parent=0
    _
  %s7 = ssub.s32 1, %s5
  %s8 = scalar_select 0, %s7, %s5
  loop: start=0, step=1, limit=4
  $region2: #{tpu_custom_call.1} parent=0 // loop_pre_header
    _
  $region3: #{tpu_custom_call.1} parent=0 // loop_header
    %s10 = sphi 0, %s14
    %p11 = scmp.ge.s32.totalorder %s10, 4
    %s17 = sphi 0, %s36
    %s18 = sphi 0, %s32
    %s19 = sphi 0, %s28
    %s20 = sphi 0, %s17
    %s21 = sphi 0, %s18
    %s22 = sphi 0, %s19
    %s23 = sphi 0, %s20
    %s24 = sphi 0, %s21
    %s25 = sphi 0, %s22
    %s43 = sphi 0, %s45
    %s46 = sphi 0, %s43
    %s47 = sphi 0, %s46
    %s63 = sphi 0, %s47
    %s67 = sphi 0, %s67
    %s69 = sphi 0, %s67
    %s70 = sphi 0, %s69
    %s84 = sphi 0, %s70
    %s88 = sphi 0, %s88
    %s90 = sphi 0, %s88
    %s91 = sphi 0, %s90
    %s105 = sphi 0, %s91
    %s109 = sphi 0, %s109
    %s111 = sphi 0, %s109
    %s112 = sphi 0, %s111
    %s126 = sphi 0, %s112
    %s134 = sphi 0, %s136
    %s137 = sphi 0, %s134
    %s138 = sphi 0, %s137
    %s154 = sphi 0, %s138
  $region4: #{tpu_custom_call.1} parent=0 // loop_header_branch
    %13 = sbr.rel (%p11) target = $region8
  $region5: #{tpu_custom_call.1} parent=0 // loop_body
    %s15 = ssub.s32 %s10, 1
    %s16 = ssub.s32 %s10, 2
    %s26 = sadd.s32 1, %s19
    %p27 = scmp.ge.s32.totalorder %s26, 1
    %s28 = scalar_select %p27, 0, %s26
    %s29 = sadd.s32 1, %s18
    %s30 = scalar_select %p27, %s29, %s18
    %p31 = scmp.ge.s32.totalorder %s30, 1
    %s32 = scalar_select %p31, 0, %s30
    %s33 = sadd.s32 1, %s17
    %s34 = scalar_select %p31, %s33, %s17
    %p35 = scmp.ge.s32.totalorder %s34, 2
    %s36 = scalar_select %p35, 0, %s34
    %s37 = sadd.s32 %s18, %s19
    %s38 = sadd.s32 %s32, %s28
    %s39 = ssub.s32 %s17, %s36
    %s40 = ssub.s32 %s37, %s38
    %s41 = sor.u32 %s39, %s40
    %p42 = scmp.eq.s32.totalorder %s41, 0
    %s44 = sadd.s32 %s43, 1
    %s45 = scalar_select %p42, %s43, %s44
    %p48 = pneg %p42
    %p49 = scmp.eq.s32.totalorder %s10, 1
    %p50 = por %p48, %p49
    %p51 = scmp.ne.s32.totalorder %s43, %s46
    %p52 = scmp.eq.s32.totalorder %s10, 0
    %p53 = por %p51, %p52
    %p54 = scmp.ne.s32.totalorder %s43, %s46
    %p55 = scmp.eq.s32.totalorder %s15, 1
    %p56 = por %p54, %p55
    %p57 = scmp.ne.s32.totalorder %s46, %s47
    %p58 = scmp.eq.s32.totalorder %s15, 0
    %p59 = por %p57, %p58
    %p60 = scmp.ne.s32.totalorder %s46, %s47
    %p61 = scmp.eq.s32.totalorder %s16, 1
    %p62 = por %p60, %p61
    %p64 = scmp.ne.s32.totalorder %s47, %s63
    %p65 = scmp.eq.s32.totalorder %s16, 0
    %p66 = por %p64, %p65
    %s68 = sadd.s32 %s67, 1
    %p71 = scmp.eq.s32.totalorder %s10, 1
    %p72 = scmp.ne.s32.totalorder %s67, %s69
    %p73 = scmp.eq.s32.totalorder %s10, 0
    %p74 = por %p72, %p73
    %p75 = scmp.ne.s32.totalorder %s67, %s69
    %p76 = scmp.eq.s32.totalorder %s15, 1
    %p77 = por %p75, %p76
    %p78 = scmp.ne.s32.totalorder %s69, %s70
    %p79 = scmp.eq.s32.totalorder %s15, 0
    %p80 = por %p78, %p79
    %p81 = scmp.ne.s32.totalorder %s69, %s70
    %p82 = scmp.eq.s32.totalorder %s16, 1
    %p83 = por %p81, %p82
    %p85 = scmp.ne.s32.totalorder %s70, %s84
    %p86 = scmp.eq.s32.totalorder %s16, 0
    %p87 = por %p85, %p86
    %s89 = sadd.s32 %s88, 1
    %p92 = scmp.eq.s32.totalorder %s10, 1
    %p93 = scmp.ne.s32.totalorder %s88, %s90
    %p94 = scmp.eq.s32.totalorder %s10, 0
    %p95 = por %p93, %p94
    %p96 = scmp.ne.s32.totalorder %s88, %s90
    %p97 = scmp.eq.s32.totalorder %s15, 1
    %p98 = por %p96, %p97
    %p99 = scmp.ne.s32.totalorder %s90, %s91
    %p100 = scmp.eq.s32.totalorder %s15, 0
    %p101 = por %p99, %p100
    %p102 = scmp.ne.s32.totalorder %s90, %s91
    %p103 = scmp.eq.s32.totalorder %s16, 1
    %p104 = por %p102, %p103
    %p106 = scmp.ne.s32.totalorder %s91, %s105
    %p107 = scmp.eq.s32.totalorder %s16, 0
    %p108 = por %p106, %p107
    %s110 = sadd.s32 %s109, 1
    %p113 = scmp.eq.s32.totalorder %s10, 1
    %p114 = scmp.ne.s32.totalorder %s109, %s111
    %p115 = scmp.eq.s32.totalorder %s10, 0
    %p116 = por %p114, %p115
    %p117 = scmp.ne.s32.totalorder %s109, %s111
    %p118 = scmp.eq.s32.totalorder %s15, 1
    %p119 = por %p117, %p118
    %p120 = scmp.ne.s32.totalorder %s111, %s112
    %p121 = scmp.eq.s32.totalorder %s15, 0
    %p122 = por %p120, %p121
    %p123 = scmp.ne.s32.totalorder %s111, %s112
    %p124 = scmp.eq.s32.totalorder %s16, 1
    %p125 = por %p123, %p124
    %p127 = scmp.ne.s32.totalorder %s112, %s126
    %p128 = scmp.eq.s32.totalorder %s16, 0
    %p129 = por %p127, %p128
    %s130 = sadd.s32 %s17, %s18
    %s131 = sadd.s32 %s36, %s32
    %s132 = ssub.s32 %s130, %s131
    %p133 = scmp.eq.s32.totalorder %s132, 0
    %s135 = sadd.s32 %s134, 1
    %s136 = scalar_select %p133, %s134, %s135
    %p139 = pneg %p133
    %p140 = scmp.eq.s32.totalorder %s10, 1
    %p141 = por %p139, %p140
    %p142 = scmp.ne.s32.totalorder %s134, %s137
    %p143 = scmp.eq.s32.totalorder %s10, 0
    %p144 = por %p142, %p143
    %p145 = scmp.ne.s32.totalorder %s134, %s137
    %p146 = scmp.eq.s32.totalorder %s15, 1
    %p147 = por %p145, %p146
    %p148 = scmp.ne.s32.totalorder %s137, %s138
    %p149 = scmp.eq.s32.totalorder %s15, 0
    %p150 = por %p148, %p149
    %p151 = scmp.ne.s32.totalorder %s137, %s138
    %p152 = scmp.eq.s32.totalorder %s16, 1
    %p153 = por %p151, %p152
    %p155 = scmp.ne.s32.totalorder %s138, %s154
    %p156 = scmp.eq.s32.totalorder %s16, 0
    %p157 = por %p155, %p156
    %p158 = scmp.le.s32.totalorder 1, %s10
    %p159 = scmp.lt.s32.totalorder %s10, 3
    %p160 = pnand %p158, %p159
    %p161 = pneg %p160
    // Predicated region
    $region9: #{tpu_custom_call.1} parent=5 // pred_check
      _
    $region10: #{tpu_custom_call.1} parent=5 // pred_check_branch
      %163 = sbr.rel (%p160) target = $region12
    $region11: #{tpu_custom_call.1} parent=5 // pred_region
      %s164 = ssub.s32 %s10, 1
      // Predicated region
      $region13: #{tpu_custom_call.1} parent=11 // pred_check
        %p165 = pneg %p80
      $region14: #{tpu_custom_call.1} parent=11 // pred_check_branch
        %167 = sbr.rel (%p165) target = $region16
      $region15: #{tpu_custom_call.1} parent=11 // pred_region
        _
      $region16: #{tpu_custom_call.1} parent=11 // pred_fallthru
        _
      // Predicated region
      $region17: #{tpu_custom_call.1} parent=11 // pred_check
        %p168 = pneg %p101
      $region18: #{tpu_custom_call.1} parent=11 // pred_check_branch
        %170 = sbr.rel (%p168) target = $region20
      $region19: #{tpu_custom_call.1} parent=11 // pred_region
        _
      $region20: #{tpu_custom_call.1} parent=11 // pred_fallthru
        _
      // Predicated region
      $region21: #{tpu_custom_call.1} parent=11 // pred_check
        %p171 = pneg %p122
      $region22: #{tpu_custom_call.1} parent=11 // pred_check_branch
        %173 = sbr.rel (%p171) target = $region24
      $region23: #{tpu_custom_call.1} parent=11 // pred_region
        _
      $region24: #{tpu_custom_call.1} parent=11 // pred_fallthru
        _
    $region12: #{tpu_custom_call.1} parent=5 // pred_fallthru
      _
    %p174 = scmp.lt.s32.totalorder %s10, 2
    // Predicated region
    $region25: #{tpu_custom_call.1} parent=5 // pred_check
      %p175 = pneg %p174
    $region26: #{tpu_custom_call.1} parent=5 // pred_check_branch
      %177 = sbr.rel (%p175) target = $region28
    $region27: #{tpu_custom_call.1} parent=5 // pred_region
      // Predicated region
      $region29: #{tpu_custom_call.1} parent=27 // pred_check
        %p178 = pneg %p53
      $region30: #{tpu_custom_call.1} parent=27 // pred_check_branch
        %180 = sbr.rel (%p178) target = $region32
      $region31: #{tpu_custom_call.1} parent=27 // pred_region
        %s181 = sadd.s32 %s18, %s19
        %p182 = scmp.lt.s32.totalorder %s17, 1
        %s183 = scalar_select %p182, %s17, 1
        %p184 = scmp.lt.s32.totalorder %s181, 0
        %s185 = scalar_select %p184, %s181, 0
        %s186 = sadd.s32 %s185, %s183
        %s187 = smul.addr %s186, 4
        %s188 = scalar_lea.vmem %s0, %s187
        %s189 = sadd.s32 %s18, %s19
      $region32: #{tpu_custom_call.1} parent=27 // pred_fallthru
        _
    $region28: #{tpu_custom_call.1} parent=5 // pred_fallthru
      _
    %p190 = scmp.le.s32.totalorder 1, %s10
    %p191 = scmp.lt.s32.totalorder %s10, 3
    %p192 = pnand %p190, %p191
    %p193 = pneg %p192
    // Predicated region
    $region33: #{tpu_custom_call.1} parent=5 // pred_check
      _
    $region34: #{tpu_custom_call.1} parent=5 // pred_check_branch
      %195 = sbr.rel (%p192) target = $region36
    $region35: #{tpu_custom_call.1} parent=5 // pred_region
      %s196 = ssub.s32 %s10, 1
      %s197 = sadd.s32 %s21, %s22
      %p198 = scmp.lt.s32.totalorder %s20, 1
      %s199 = scalar_select %p198, %s20, 1
      %p200 = scmp.lt.s32.totalorder %s197, 0
      %s201 = scalar_select %p200, %s197, 0
      %s202 = sadd.s32 %s201, %s199
      %s203 = smul.addr %s202, 4
      %s204 = scalar_lea.vmem %s0, %s203
      %p205 = pneg %p59
      %p206 = pneg %p56
      %p207 = pneg %p80
      %p208 = pneg %p77
      %p209 = pneg %p101
      %p210 = pneg %p98
      %p211 = pneg %p122
      %p212 = pneg %p119
      %p213 = pneg %p150
      %p214 = pneg %p147
      %s215 = sadd.s32 %s20, %s21
      %p216 = scmp.lt.s32.totalorder %s215, 1
      %s217 = scalar_select %p216, %s215, 1
      %s218 = smul.addr %s217, 8
      %s219 = scalar_lea.vmem %s4, %s218
      %s220 = sadd.s32 %s21, %s22
      %p221 = scmp.lt.s32.totalorder %s20, 1
      %s222 = scalar_select %p221, %s20, 1
      %p223 = scmp.lt.s32.totalorder %s220, 0
      %s224 = scalar_select %p223, %s220, 0
      %s225 = sadd.s32 %s224, %s222
      %s226 = smul.addr %s225, 4
      %s227 = scalar_lea.vmem %s0, %s226
      %s228 = sadd.s32 %s21, %s22
      %s229 = sadd.s32 %s20, %s21
      %p230 = scmp.lt.s32.totalorder %s229, 1
      %s231 = scalar_select %p230, %s229, 1
      %s232 = smul.addr %s231, 8
      %s233 = scalar_lea.vmem %s4, %s232
      %s234 = sadd.s32 %s20, %s21
      %p236 = scmp.eq.s32.totalorder %s22, 0
      // Predicated region
      $region37: #{tpu_custom_call.1} parent=35 // pred_check
        %p237 = pneg %p236
      $region38: #{tpu_custom_call.1} parent=35 // pred_check_branch
        %239 = sbr.rel (%p237) target = $region40
      $region39: #{tpu_custom_call.1} parent=35 // pred_region
        %vm240 = vcmask 130048
        %241 = vst.msk [vmem:[#allocation2] sm:$0xff] %vm240, 0.0
        %242 = vst.msk [vmem:[#allocation2 + $0x8] sm:$0xff] %vm240, 0.0
        %243 = vst.msk [vmem:[#allocation2 + $0x10] sm:$0xff] %vm240, 0.0
        %244 = vst.msk [vmem:[#allocation2 + $0x18] sm:$0xff] %vm240, 0.0
      $region40: #{tpu_custom_call.1} parent=35 // pred_fallthru
        _
      %v245 = vld [vmem:[%s227] sm:$0xf]
      %v246 = vpack.c.bf16 %v245, %v245
      %v247 = vld [vmem:[%s1] sm:$0xf]
      %v248 = vld [vmem:[%s1 + $0x4] sm:$0xf]
      %v249 = vld [vmem:[%s1 + $0x8] sm:$0xf]
      %v250 = vld [vmem:[%s1 + $0xc] sm:$0xf]
      %v255 = vunpack.c.l.b16 %v247
      %v256 = vunpack.c.l.b16 %v248
      %v257 = vunpack.c.l.b16 %v249
      %v258 = vunpack.c.l.b16 %v250
      %v259 = vpack.c.b16 %v256, %v255
      %v260 = vpack.c.b16 %v258, %v257
      %vm261 = vcmask 31744
      %v263 = vsel %vm261, %v259, 0
      %v266 = vsel %vm261, %v260, 0
      %vm268 = vcmask 1041408
      %v270 = vsel %vm268, %v246, 0
      %272 = vmatprep.subr.bf16.mxu0 0
      %273 = vmatpush1.bf16.msra.mxu0 %v270
      %274 = vmatprep.subr.bf16.mxu0 0
      %275 = vmatpush1.bf16.msra.mxu0 0
      %276 = vmatprep.subr.bf16.mxu0 0
      %277 = vmatpush1.bf16.msra.mxu0 0
      %278 = vmatprep.subr.bf16.mxu0 0
      %279 = vmatpush1.bf16.msra.mxu0 0
      %280 = vmatprep.subr.bf16.mxu0 0
      %281 = vmatpush1.bf16.msra.mxu0 0
      %282 = vmatprep.subr.bf16.mxu0 0
      %283 = vmatpush1.bf16.msra.mxu0 0
      %284 = vmatprep.subr.bf16.mxu0 0
      %285 = vmatpush1.bf16.msra.mxu0 0
      %286 = vmatprep.subr.bf16.mxu0 0
      %287 = vmatpush1.bf16.msra.mxu0 0
      %288 = vmatprep.subr.bf16.mxu0 0
      %289 = vmatpush1.bf16.msra.mxu0 0
      %290 = vmatprep.subr.bf16.mxu0 0
      %291 = vmatpush1.bf16.msra.mxu0 0
      %292 = vmatprep.subr.bf16.mxu0 0
      %293 = vmatpush1.bf16.msra.mxu0 0
      %294 = vmatprep.subr.bf16.mxu0 0
      %295 = vmatpush1.bf16.msra.mxu0 0
      %296 = vmatprep.subr.bf16.mxu0 0
      %297 = vmatpush1.bf16.msra.mxu0 0
      %298 = vmatprep.subr.bf16.mxu0 0
      %299 = vmatpush1.bf16.msra.mxu0 0
      %300 = vmatprep.subr.bf16.mxu0 0
      %301 = vmatpush1.bf16.msra.mxu0 0
      %302 = vmatprep.subr.bf16.mxu0 0
      %303 = vmatpush1.bf16.msra.mxu0 0
      %304 = vmatprep.mubr.bf16.mxu0 0
      %305 = vmatmul.mubr.bf16.gmra.mrb[0].mxu0 %v263
      %v306 = vpop.f32.mrb[0].mxu0
      %v307 = vadd.f32 0.0, %v306
      %v308 = vpop.f32.mrb[0].mxu0
      %v309 = vpop.f32.mrb[0].mxu0
      %v310 = vadd.f32 0.0, %v309
      %v311 = vpop.f32.mrb[0].mxu0
      %312 = vmatprep.mubr.bf16.mxu0 0
      %313 = vmatmul.mubr.bf16.gmra.mrb[0].mxu0 %v266
      %v314 = vpop.f32.mrb[0].mxu0
      %v315 = vadd.f32 0.0, %v314
      %v316 = vpop.f32.mrb[0].mxu0
      %v317 = vpop.f32.mrb[0].mxu0
      %v318 = vadd.f32 0.0, %v317
      %v319 = vpop.f32.mrb[0].mxu0
      %320 = vdwg.mxu0
      %v321 = vld [vmem:[%s2] sm:$0xff]
      %v322 = vld [vmem:[%s2 + $0x8] sm:$0xff]
      %v323 = vld [vmem:[%s2 + $0x10] sm:$0xff]
      %v324 = vld [vmem:[%s2 + $0x18] sm:$0xff]
      %326 = vset.pattern.permute.xlu0 0
      %327 = vperm.xlu0 %326, %v321
      %v328 = vpop.permute.xlu0 %327
      %331 = vset.pattern.permute.xlu0 0
      %332 = vperm.xlu0 %331, %v322
      %v333 = vpop.permute.xlu0 %332
      %336 = vset.pattern.permute.xlu0 0
      %337 = vperm.xlu0 %336, %v323
      %v338 = vpop.permute.xlu0 %337
      %341 = vset.pattern.permute.xlu0 0
      %342 = vperm.xlu0 %341, %v324
      %v343 = vpop.permute.xlu0 %342
      %v345 = vmax.f32 %v307, %v328
      %v346 = vmax.f32 %v310, %v333
      %v347 = vmax.f32 %v315, %v338
      %v348 = vmax.f32 %v318, %v343
      %v349 = vld [vmem:[#allocation2] sm:$0xff]
      %v350 = vld [vmem:[#allocation2 + $0x8] sm:$0xff]
      %v351 = vld [vmem:[#allocation2 + $0x10] sm:$0xff]
      %v352 = vld [vmem:[#allocation2 + $0x18] sm:$0xff]
      %v353 = vadd.f32 %v349, %v345
      %v354 = vadd.f32 %v350, %v346
      %v355 = vadd.f32 %v351, %v347
      %v356 = vadd.f32 %v352, %v348
      %vm357 = vcmask 130048
      %358 = vst.msk [vmem:[#allocation2] sm:$0xff] %vm357, %v353
      %359 = vst.msk [vmem:[#allocation2 + $0x8] sm:$0xff] %vm357, %v354
      %360 = vst.msk [vmem:[#allocation2 + $0x10] sm:$0xff] %vm357, %v355
      %361 = vst.msk [vmem:[#allocation2 + $0x18] sm:$0xff] %vm357, %v356
      // Predicated region
      $region41: #{tpu_custom_call.1} parent=35 // pred_check
        %p362 = pneg %p236
      $region42: #{tpu_custom_call.1} parent=35 // pred_check_branch
        %364 = sbr.rel (%p362) target = $region44
      $region43: #{tpu_custom_call.1} parent=35 // pred_region
        %v365 = vld [vmem:[#allocation2] sm:$0xff]
        %v366 = vld [vmem:[#allocation2 + $0x8] sm:$0xff]
        %v367 = vld [vmem:[#allocation2 + $0x10] sm:$0xff]
        %v368 = vld [vmem:[#allocation2 + $0x18] sm:$0xff]
        %v369 = vsel %vm357, %v365, 0.0
        %370 = vadd.xlane.f32.xlu0 %v369
        %v371 = vpop.xlane.xlu0 %370
        %v372 = vsel %vm357, %v366, 0.0
        %373 = vadd.xlane.f32.xlu0 %v372
        %v374 = vpop.xlane.xlu0 %373
        %v375 = vsel %vm357, %v367, 0.0
        %376 = vadd.xlane.f32.xlu0 %v375
        %v377 = vpop.xlane.xlu0 %376
        %v378 = vsel %vm357, %v368, 0.0
        %379 = vadd.xlane.f32.xlu0 %v378
        %v380 = vpop.xlane.xlu0 %379
        %v381 = vld [vmem:[%s3] sm:$0xff]
        %vm382 = vcmask 261120
        %v384 = vsel %vm382, %v381, 0
        %386 = vmatprep.subr.mxu0 0.0
        %387 = vmatpush1.msra.mxu0 %v371
        %388 = vmatprep.subr.mxu0 0.0
        %389 = vmatpush1.msra.mxu0 %v374
        %390 = vmatprep.subr.mxu0 0.0
        %391 = vmatpush1.msra.mxu0 %v377
        %392 = vmatprep.subr.mxu0 0.0
        %393 = vmatpush1.msra.mxu0 %v380
        %394 = vmatprep.subr.mxu0 0.0
        %395 = vmatpush1.msra.mxu0 0.0
        %396 = vmatprep.subr.mxu0 0.0
        %397 = vmatpush1.msra.mxu0 0.0
        %398 = vmatprep.subr.mxu0 0.0
        %399 = vmatpush1.msra.mxu0 0.0
        %400 = vmatprep.subr.mxu0 0.0
        %401 = vmatpush1.msra.mxu0 0.0
        %402 = vmatprep.subr.mxu0 0.0
        %403 = vmatpush1.msra.mxu0 0.0
        %404 = vmatprep.subr.mxu0 0.0
        %405 = vmatpush1.msra.mxu0 0.0
        %406 = vmatprep.subr.mxu0 0.0
        %407 = vmatpush1.msra.mxu0 0.0
        %408 = vmatprep.subr.mxu0 0.0
        %409 = vmatpush1.msra.mxu0 0.0
        %410 = vmatprep.subr.mxu0 0.0
        %411 = vmatpush1.msra.mxu0 0.0
        %412 = vmatprep.subr.mxu0 0.0
        %413 = vmatpush1.msra.mxu0 0.0
        %414 = vmatprep.subr.mxu0 0.0
        %415 = vmatpush1.msra.mxu0 0.0
        %416 = vmatprep.subr.mxu0 0.0
        %417 = vmatpush1.msra.mxu0 0.0
        %418 = vmatprep.subr.mxu0 0.0
        %419 = vmatpush1.msra.mxu0 0.0
        %420 = vmatprep.subr.mxu0 0.0
        %421 = vmatpush1.msra.mxu0 0.0
        %422 = vmatprep.subr.mxu0 0.0
        %423 = vmatpush1.msra.mxu0 0.0
        %424 = vmatprep.subr.mxu0 0.0
        %425 = vmatpush1.msra.mxu0 0.0
        %426 = vmatprep.subr.mxu0 0.0
        %427 = vmatpush1.msra.mxu0 0.0
        %428 = vmatprep.subr.mxu0 0.0
        %429 = vmatpush1.msra.mxu0 0.0
        %430 = vmatprep.subr.mxu0 0.0
        %431 = vmatpush1.msra.mxu0 0.0
        %432 = vmatprep.subr.mxu0 0.0
        %433 = vmatpush1.msra.mxu0 0.0
        %434 = vmatprep.subr.mxu0 0.0
        %435 = vmatpush1.msra.mxu0 0.0
        %436 = vmatprep.subr.mxu0 0.0
        %437 = vmatpush1.msra.mxu0 0.0
        %438 = vmatprep.subr.mxu0 0.0
        %439 = vmatpush1.msra.mxu0 0.0
        %440 = vmatprep.subr.mxu0 0.0
        %441 = vmatpush1.msra.mxu0 0.0
        %442 = vmatprep.subr.mxu0 0.0
        %443 = vmatpush1.msra.mxu0 0.0
        %444 = vmatprep.subr.mxu0 0.0
        %445 = vmatpush1.msra.mxu0 0.0
        %446 = vmatprep.subr.mxu0 0.0
        %447 = vmatpush1.msra.mxu0 0.0
        %448 = vmatprep.subr.mxu0 0.0
        %449 = vmatpush1.msra.mxu0 0.0
        %450 = vmatprep.mubr.f32.mxu0 0.0
        %451 = vmatmul.mubr.f32.gmra.mrb[0].mxu0 %v384
        %v452 = vpop.f32.mrb[0].mxu0
        %v453 = vadd.f32 0.0, %v452
        %v454 = vpop.f32.mrb[0].mxu0
        %455 = vdwg.mxu0
        %vm456 = vcmask 7168
        %457 = vst.msk [vmem:[%s233] sm:$0xff] %vm456, %v453
      $region44: #{tpu_custom_call.1} parent=35 // pred_fallthru
        _
      %s458 = sadd.s32 %s20, %s21
      %p459 = scmp.lt.s32.totalorder %s458, 1
      %s460 = scalar_select %p459, %s458, 1
      %s461 = smul.addr %s460, 8
      %s462 = scalar_lea.vmem %s4, %s461
      // Predicated region
      $region45: #{tpu_custom_call.1} parent=35 // pred_check
        %p463 = pneg %p147
      $region46: #{tpu_custom_call.1} parent=35 // pred_check_branch
        %465 = sbr.rel (%p463) target = $region48
      $region47: #{tpu_custom_call.1} parent=35 // pred_region
        %s466 = sadd.s32 %s20, %s21
      $region48: #{tpu_custom_call.1} parent=35 // pred_fallthru
        _
    $region36: #{tpu_custom_call.1} parent=5 // pred_fallthru
      _
    %p467 = scmp.le.s32.totalorder 2, %s10
    // Predicated region
    $region49: #{tpu_custom_call.1} parent=5 // pred_check
      %p468 = pneg %p467
    $region50: #{tpu_custom_call.1} parent=5 // pred_check_branch
      %470 = sbr.rel (%p468) target = $region52
    $region51: #{tpu_custom_call.1} parent=5 // pred_region
      %s471 = ssub.s32 %s10, 2
      // Predicated region
      $region53: #{tpu_custom_call.1} parent=51 // pred_check
        %p472 = pneg %p153
      $region54: #{tpu_custom_call.1} parent=51 // pred_check_branch
        %474 = sbr.rel (%p472) target = $region56
      $region55: #{tpu_custom_call.1} parent=51 // pred_region
        %s475 = sadd.s32 %s23, %s24
        %p476 = scmp.lt.s32.totalorder %s475, 1
        %s477 = scalar_select %p476, %s475, 1
        %s478 = smul.addr %s477, 8
        %s479 = scalar_lea.vmem %s4, %s478
      $region56: #{tpu_custom_call.1} parent=51 // pred_fallthru
        _
    $region52: #{tpu_custom_call.1} parent=5 // pred_fallthru
      _
  $region6: #{tpu_custom_call.1} parent=0 // loop_footer
    %s14 = sadd.s32 1, %s10
  $region7: #{tpu_custom_call.1} parent=0 // loop_footer_branch
    %9 = sbr.rel target = $region3
  $region8: #{tpu_custom_call.1} parent=0 // loop_exit
    _

</llo_original>
